<compile_context>
chip_gen: v6e
topology: v6e:2x2x1
jax: 0.10.0
libtpu: 0.0.40
codegen_flags: <defaults>
</compile_context>

<pallas_src>
import math

import jax
import jax.numpy as jnp
from jax.experimental import pallas as pl
from jax.experimental.pallas import tpu as pltpu

_MB_CAP = 32768                       # max flattened-feature lanes per tile
_TB_CAP = 256                         # max time rows folded per grid step
_TARGET_BLOCK_BYTES = 2 * 1024 * 1024 # per-block DMA target (~roofline sweet spot)


def _apply_activation(x, name: str):
    if name == "identity":
        return x
    if name == "relu":
        return jnp.maximum(x, 0.0)
    if name == "tanh":
        return jnp.tanh(x)
    if name == "sigmoid":
        return jax.nn.sigmoid(x)
    if name == "leaky_relu0p5":
        return jnp.where(x >= 0, x, 0.5 * x)
    raise ValueError(f"unsupported activation: {name}")


def _make_grouped_kernel(activation: str, t_total: int, tb: int, needs_mask: bool):
    """Reduction kernel for T >= 8 (tb is a multiple of 8)."""
    n_groups = tb // 8

    def kernel(x_ref, o_ref, acc_ref):
        t = pl.program_id(1)

        @pl.when(t == 0)
        def _init():
            acc_ref[...] = jnp.zeros_like(acc_ref)

        # Stream the block one sublane tile (8 time rows) at a time: each
        # group is load -> (mask) -> add -> store, all VPU work, tiny live set.
        for g in range(n_groups):
            xg = x_ref[g * 8:(g + 1) * 8, :].astype(jnp.float32)
            if needs_mask:
                row = (jax.lax.broadcasted_iota(jnp.int32, (8, 1), 0)
                       + (t * tb + g * 8))
                xg = jnp.where(row < t_total, xg, 0.0)
            acc_ref[...] += xg

        @pl.when(t == pl.num_programs(1) - 1)
        def _finalize():
            total = jnp.sum(acc_ref[...], axis=0, keepdims=True)
            o_ref[...] = _apply_activation(total, activation).astype(o_ref.dtype)

    return kernel


def _make_simple_kernel(activation: str):
    """Single-shot kernel for very short time axes (T < 8)."""

    def kernel(x_ref, o_ref):
        total = jnp.sum(x_ref[...].astype(jnp.float32), axis=0, keepdims=True)
        o_ref[...] = _apply_activation(total, activation).astype(o_ref.dtype)

    return kernel


def time_series_to_features(x: jax.Array, activation: str = "identity") -> jax.Array:
    """Sum `x` over its leading time axis and apply `activation`.

    x: (T, *feature_shape)  ->  out: feature_shape
    """
    T = x.shape[0]
    feat_shape = x.shape[1:]
    M = int(math.prod(feat_shape)) if feat_shape else 1
    out_dtype = x.dtype

    if T == 0 or M == 0:
        zeros = jnp.zeros(feat_shape, dtype=jnp.float32)
        return _apply_activation(zeros, activation).astype(out_dtype)

    # Free layout plumbing: flatten features onto the lane axis.
    x2 = x.reshape(T, M)
    itemsize = x.dtype.itemsize

    # Lane (feature) tiling.
    if M <= _MB_CAP:
        mb, m_pad = M, M                  # full-extent block: allowed for any M
    else:
        mb = _MB_CAP                      # multiple of 128 -> lane-dense tiles
        m_pad = pl.cdiv(M, mb) * mb
        if m_pad != M:
            # TODO(synk): zero-pad costs one extra HBM copy; rare edge case.
            x2 = jnp.pad(x2, ((0, 0), (0, m_pad - M)))
    grid_m = m_pad // mb

    n_trans = M if activation in ("tanh", "sigmoid") else 0
    cost = pl.CostEstimate(
        flops=T * M,
        transcendentals=n_trans,
        bytes_accessed=T * M * itemsize + M * jnp.dtype(out_dtype).itemsize,
    )

    if T < 8:
        out2 = pl.pallas_call(
            _make_simple_kernel(activation),
            out_shape=jax.ShapeDtypeStruct((1, m_pad), out_dtype),
            grid_spec=pltpu.PrefetchScalarGridSpec(
                num_scalar_prefetch=0,
                grid=(grid_m,),
                in_specs=[pl.BlockSpec((T, mb), lambda m: (0, m))],
                out_specs=pl.BlockSpec((1, mb), lambda m: (0, m)),
            ),
            compiler_params=pltpu.CompilerParams(
                dimension_semantics=("parallel",)),
            cost_estimate=cost,
        )(x2)
        return out2[0, :M].reshape(feat_shape)

    # Time (reduction) tiling: fold as many multiple-of-8 rows per grid step
    # as keeps the input block near ~2 MiB (adapts to dtype and small M).
    tb = _TARGET_BLOCK_BYTES // max(mb * itemsize, 1)
    tb = max(8, min(tb, _TB_CAP, (T // 8) * 8))
    tb -= tb % 8
    grid_t = pl.cdiv(T, tb)
    needs_mask = (T % tb) != 0

    kernel = _make_grouped_kernel(activation, T, tb, needs_mask)

    out2 = pl.pallas_call(
        kernel,
        out_shape=jax.ShapeDtypeStruct((1, m_pad), out_dtype),
        grid_spec=pltpu.PrefetchScalarGridSpec(
            num_scalar_prefetch=0,
            grid=(grid_m, grid_t),                       # reduction axis last
            in_specs=[pl.BlockSpec((tb, mb), lambda m, t: (t, m))],
            out_specs=pl.BlockSpec((1, mb), lambda m, t: (0, m)),
            scratch_shapes=[pltpu.VMEM((8, mb), jnp.float32)],
        ),
        compiler_params=pltpu.CompilerParams(
            dimension_semantics=("parallel", "arbitrary")),
        cost_estimate=cost,
    )(x2)
    return out2[0, :M].reshape(feat_shape)


if __name__ == "__main__":
    # Shapes consistent with a phlower time-series tensor: (T, N, F).
    key = jax.random.PRNGKey(0)
    T, N, F = 8, 16, 32

    # Primary check: float32, "relu" (module docstring example).
    x = jax.random.normal(key, (T, N, F), dtype=jnp.float32)
    out = jax.block_until_ready(time_series_to_features(x, activation="relu"))
    ref = jnp.maximum(jnp.sum(x, axis=0), 0.0)
    assert out.shape == (N, F)
    assert jnp.allclose(out, ref, atol=1e-5, rtol=1e-5), "mismatch (relu/f32)"

    # Masked remainder path: T % tb != 0.
    x_long = jax.random.normal(jax.random.PRNGKey(1), (37, N, F), dtype=jnp.float32)
    out_long = jax.block_until_ready(time_series_to_features(x_long))
    assert jnp.allclose(out_long, jnp.sum(x_long, axis=0), atol=1e-4, rtol=1e-4), \
        "mismatch (mask path)"

    # Non-f32 path: bf16 input uses f32 accumulation, tanh activation.
    x_bf = jax.random.normal(jax.random.PRNGKey(2), (T, N, F), dtype=jnp.bfloat16)
    out_bf = jax.block_until_ready(time_series_to_features(x_bf, activation="tanh"))
    ref_bf = jnp.tanh(jnp.sum(x_bf.astype(jnp.float32), axis=0)).astype(jnp.bfloat16)
    assert jnp.allclose(out_bf.astype(jnp.float32), ref_bf.astype(jnp.float32),
                        atol=2e-2, rtol=2e-2), "mismatch (bf16 path)"

    # Short-time path (T < 8) with non-128-aligned feature width.
    x_s = jax.random.normal(jax.random.PRNGKey(3), (5, 3, 7), dtype=jnp.float32)
    out_s = jax.block_until_ready(time_series_to_features(x_s))
    assert out_s.shape == (3, 7)
    assert jnp.allclose(out_s, jnp.sum(x_s, axis=0), atol=1e-5, rtol=1e-5), \
        "mismatch (short-T path)"

    # T >= 8, unaligned features, masked remainder block.
    x_u = jax.random.normal(jax.random.PRNGKey(4), (9, 3, 7), dtype=jnp.float32)
    out_u = jax.block_until_ready(time_series_to_features(x_u))
    assert jnp.allclose(out_u, jnp.sum(x_u, axis=0), atol=1e-5, rtol=1e-5), \
        "mismatch (unaligned mask path)"

    print("KERNEL_OK")
</pallas_src>

<mosaic_0001>
module attributes {stable_mosaic.version = 11 : i64} {
  func.func @kernel(%arg0: i32, %arg1: i32, %arg2: memref<8x512xf32, #tpu.memory_space<vmem>>, %arg3: memref<1x512xf32, #tpu.memory_space<vmem>>, %arg4: memref<8x512xf32, #tpu.memory_space<vmem>>) attributes {dimension_semantics = [#tpu.dimension_semantics<parallel>, #tpu.dimension_semantics<arbitrary>], iteration_bounds = array<i64: 1, 1>, scalar_prefetch = 0 : i64, scratch_operands = 1 : i64, tpu.core_type = #tpu.core_type<tc>, window_params = [{transform_indices = @transform_0, window_bounds = array<i64: 8, 512>}, {transform_indices = @transform_1, window_bounds = array<i64: 1, 512>}]} {
    %c0_i32 = arith.constant 0 : i32
    %0 = arith.cmpi eq, %arg1, %c0_i32 : i32
    %1 = arith.extui %0 : i1 to i32
    %c0_i32_0 = arith.constant 0 : i32
    %2 = arith.cmpi ne, %1, %c0_i32_0 : i32
    scf.if %2 {
      %cst = arith.constant 0.000000e+00 : f32
      %10 = vector.broadcast %cst : f32 to vector<8x512xf32>
      %c0_8 = arith.constant 0 : index
      %c0_9 = arith.constant 0 : index
      %11 = vector.load %arg4[%c0_8, %c0_9] : memref<8x512xf32, #tpu.memory_space<vmem>>, vector<8x512xf32>
      tpu.vector_store %arg4[%c0_8, %c0_9], %10 {strides = array<i32>} : memref<8x512xf32, #tpu.memory_space<vmem>>, vector<8x512xf32>,
    } else {
    }
    %c0 = arith.constant 0 : index
    %c0_1 = arith.constant 0 : index
    %3 = vector.load %arg2[%c0, %c0_1] : memref<8x512xf32, #tpu.memory_space<vmem>>, vector<8x512xf32>
    %c0_2 = arith.constant 0 : index
    %c0_3 = arith.constant 0 : index
    %4 = vector.load %arg4[%c0_2, %c0_3] : memref<8x512xf32, #tpu.memory_space<vmem>>, vector<8x512xf32>
    %5 = arith.addf %4, %3 : vector<8x512xf32>
    %c0_4 = arith.constant 0 : index
    %c0_5 = arith.constant 0 : index
    %6 = vector.load %arg4[%c0_4, %c0_5] : memref<8x512xf32, #tpu.memory_space<vmem>>, vector<8x512xf32>
    tpu.vector_store %arg4[%c0_4, %c0_5], %5 {strides = array<i32>} : memref<8x512xf32, #tpu.memory_space<vmem>>, vector<8x512xf32>,
    %c0_i32_6 = arith.constant 0 : i32
    %7 = arith.cmpi eq, %arg1, %c0_i32_6 : i32
    %8 = arith.extui %7 : i1 to i32
    %c0_i32_7 = arith.constant 0 : i32
    %9 = arith.cmpi ne, %8, %c0_i32_7 : i32
    scf.if %9 {
      %c0_8 = arith.constant 0 : index
      %c0_9 = arith.constant 0 : index
      %10 = vector.load %arg4[%c0_8, %c0_9] : memref<8x512xf32, #tpu.memory_space<vmem>>, vector<8x512xf32>
      %cst = arith.constant dense<0.000000e+00> : vector<512xf32>
      %11 = vector.multi_reduction <add>, %10, %cst [0] : vector<8x512xf32> to vector<512xf32>
      %12 = vector.shape_cast %11 : vector<512xf32> to vector<1x512xf32>
      %cst_10 = arith.constant 0.000000e+00 : f32
      %13 = vector.broadcast %cst_10 : f32 to vector<1x512xf32>
      %14 = arith.maximumf %12, %13 : vector<1x512xf32>
      %c0_11 = arith.constant 0 : index
      %c0_12 = arith.constant 0 : index
      %15 = vector.load %arg3[%c0_11, %c0_12] : memref<1x512xf32, #tpu.memory_space<vmem>>, vector<1x512xf32>
      tpu.vector_store %arg3[%c0_11, %c0_12], %14 {strides = array<i32>} : memref<1x512xf32, #tpu.memory_space<vmem>>, vector<1x512xf32>,
    } else {
    }
    return
  }
  func.func @transform_0(%arg0: i32, %arg1: i32) -> (i32, i32) {
    %c0_i32 = arith.constant 0 : i32
    return %arg1, %arg0 : i32, i32
  }
  func.func @transform_1(%arg0: i32, %arg1: i32) -> (i32, i32) {
    %c0_i32 = arith.constant 0 : i32
    %c0_i32_0 = arith.constant 0 : i32
    return %c0_i32, %arg0 : i32, i32
  }
}

</mosaic_0001>

<llo_original>
// kernel: tpu_custom_call.1
$region0: #{tpu_custom_call.1}
  #allocation0 [shape = 'u32[]', space=smem, size = 0x4, offset = 0x4, fixed_abs, tag = 'smem constant byte address 0x4 - core index']
  #allocation1 [shape = 'u32[144,128]{1,0:T(1,128)}', space=vmem, size = 0x12000, scoped, tag = 'internal scratch']
  #allocation2 [shape = 'f32[8,512]{1,0:T(8,128)}', space=vmem, size = 0x4000, scoped, tag = 'scratch operand']
  %s0 = inlined_call_operand.hbm [shape: f32[8,512], index: 0, kind: input, shape index: {}]
  %s1 = inlined_call_operand.hbm [shape: f32[1,512], index: 1, kind: output, shape index: {}]
  %s2 = sld [smem:[#allocation0]]
  $region26: #{tpu_custom_call.1} parent=0
    _
  %s4 = ssub.s32 1, %s2
  %s5 = scalar_select 0, %s4, %s2
  $region1: #{tpu_custom_call.1} parent=0
    #allocation3 [shape = 'u8[16384]{0}', space=vmem, size = 0x4000, scoped, tag = 'input window, operand 0, single buffered']
    #allocation4 [shape = 's32[1]{0}', space=sflag, size = 0x4, scoped, tag = 'scoped memory for tpu_custom_call.1']
    #allocation5 [shape = 's32[1]{0}', space=sflag, size = 0x4, scoped, tag = 'scoped memory for tpu_custom_call.1']
    #allocation6 [shape = 'u8[2048]{0}', space=vmem, size = 0x800, scoped, tag = 'output window, operand 0, single buffered']
    %6 = vsyncpa [#allocation4], 0
    %7 = vsyncpa [#allocation5], 0
    // Predicated region
    $region2: #{tpu_custom_call.1} parent=1 // pred_check
      _
    $region3: #{tpu_custom_call.1} parent=1 // pred_check_branch
      %9 = sbr.rel (0) target = $region5
    $region4: #{tpu_custom_call.1} parent=1 // pred_region
      %s11 = ssub.s32 512, 512
      %12 = vsyncadd [#allocation4], %s11
      %s14 = sshll.u32 [#allocation3], 4
      %s15 = int_to_ptr.vmem [resolvable:$true] %s14
      %17 = dma.hbm_to_vmem [thread:$0]  %s0, 512, %s15, [#allocation4]
    $region5: #{tpu_custom_call.1} parent=1 // pred_fallthru
      _
    // Predicated region
    $region6: #{tpu_custom_call.1} parent=1 // pred_check
      _
    $region7: #{tpu_custom_call.1} parent=1 // pred_check_branch
      %19 = sbr.rel (0) target = $region9
    $region8: #{tpu_custom_call.1} parent=1 // pred_region
      %20 = dma.done [#allocation4], 512
    $region9: #{tpu_custom_call.1} parent=1 // pred_fallthru
      _
    %p21 = scmp.eq.s32.totalorder 0, 0
    // Predicated region
    $region10: #{tpu_custom_call.1} parent=1 // pred_check
      %p22 = pneg %p21
    $region11: #{tpu_custom_call.1} parent=1 // pred_check_branch
      %24 = sbr.rel (%p22) target = $region13
    $region12: #{tpu_custom_call.1} parent=1 // pred_region
      %25 = vst [vmem:[#allocation2] sm:$0xff] 0.0
      %26 = vst [vmem:[#allocation2 + $0x8] sm:$0xff] 0.0
      %27 = vst [vmem:[#allocation2 + $0x10] sm:$0xff] 0.0
      %28 = vst [vmem:[#allocation2 + $0x18] sm:$0xff] 0.0
    $region13: #{tpu_custom_call.1} parent=1 // pred_fallthru
      _
    %v29 = vld [vmem:[#allocation3] sm:$0xff]
    %v30 = vld [vmem:[#allocation3 + $0x8] sm:$0xff]
    %v31 = vld [vmem:[#allocation3 + $0x10] sm:$0xff]
    %v32 = vld [vmem:[#allocation3 + $0x18] sm:$0xff]
    %v33 = vld [vmem:[#allocation2] sm:$0xff]
    %v34 = vld [vmem:[#allocation2 + $0x8] sm:$0xff]
    %v35 = vld [vmem:[#allocation2 + $0x10] sm:$0xff]
    %v36 = vld [vmem:[#allocation2 + $0x18] sm:$0xff]
    %v37 = vadd.f32 %v33, %v29
    %v38 = vadd.f32 %v34, %v30
    %v39 = vadd.f32 %v35, %v31
    %v40 = vadd.f32 %v36, %v32
    %41 = vst [vmem:[#allocation2] sm:$0xff] %v37
    %42 = vst [vmem:[#allocation2 + $0x8] sm:$0xff] %v38
    %43 = vst [vmem:[#allocation2 + $0x10] sm:$0xff] %v39
    %44 = vst [vmem:[#allocation2 + $0x18] sm:$0xff] %v40
    // Predicated region
    $region14: #{tpu_custom_call.1} parent=1 // pred_check
      %p45 = pneg %p21
    $region15: #{tpu_custom_call.1} parent=1 // pred_check_branch
      %47 = sbr.rel (%p45) target = $region17
    $region16: #{tpu_custom_call.1} parent=1 // pred_region
      %v48 = vld [vmem:[#allocation2] sm:$0xff]
      %v49 = vld [vmem:[#allocation2 + $0x8] sm:$0xff]
      %v50 = vld [vmem:[#allocation2 + $0x10] sm:$0xff]
      %v51 = vld [vmem:[#allocation2 + $0x18] sm:$0xff]
      %v52 = vrot.slane %v48, 4
      %v53 = vadd.f32 %v48, %v52
      %v54 = vrot.slane %v53, 2
      %v55 = vadd.f32 %v53, %v54
      %v56 = vrot.slane %v55, 1
      %v57 = vadd.f32 %v55, %v56
      %v58 = vrot.slane %v49, 4
      %v59 = vadd.f32 %v49, %v58
      %v60 = vrot.slane %v59, 2
      %v61 = vadd.f32 %v59, %v60
      %v62 = vrot.slane %v61, 1
      %v63 = vadd.f32 %v61, %v62
      %v64 = vrot.slane %v50, 4
      %v65 = vadd.f32 %v50, %v64
      %v66 = vrot.slane %v65, 2
      %v67 = vadd.f32 %v65, %v66
      %v68 = vrot.slane %v67, 1
      %v69 = vadd.f32 %v67, %v68
      %v70 = vrot.slane %v51, 4
      %v71 = vadd.f32 %v51, %v70
      %v72 = vrot.slane %v71, 2
      %v73 = vadd.f32 %v71, %v72
      %v74 = vrot.slane %v73, 1
      %v75 = vadd.f32 %v73, %v74
      %v76 = vmax.f32 %v57, 0.0
      %v77 = vmax.f32 %v63, 0.0
      %v78 = vmax.f32 %v69, 0.0
      %v79 = vmax.f32 %v75, 0.0
      %v84 = vcombine.low %v76, %v77
      %v85 = vcombine.low %v78, %v79
      %v87 = vunpack.c.l.s4 1966171168
      %v88 = vunpack.c.0.s8 %v87
      %v89 = vlaneseq
      %v90 = vshrl.u32 %v89, 7
      %v91 = vsub.s32 %v88, %v90
      %v92 = vrot.slane %v84, %v91
      %v94 = vunpack.c.l.s4 1966171168
      %v95 = vunpack.c.0.s8 %v94
      %v96 = vlaneseq
      %v97 = vshrl.u32 %v96, 7
      %v98 = vsub.s32 %v95, %v97
      %v99 = vrot.slane %v85, %v98
      %v100 = vcombine.low %v92, %v99
      %v102 = vunpack.c.l.s4 1966171168
      %v103 = vunpack.c.0.s8 %v102
      %v104 = vlaneseq
      %v105 = vshrl.u32 %v104, 7
      %v106 = vsub.s32 %v103, %v105
      %v107 = vrot.slane %v100, %v106
      %v109 = vlaneseq
      %vm110 = vcmp.ge.s32.totalorder %v109, 0
      %vm111 = vcmp.lt.s32.totalorder %v109, 512
      %vm112 = vmand %vm110, %vm111
      %113 = vst.msk [vmem:[#allocation6] sm:$0xf] %vm112, %v107
    $region17: #{tpu_custom_call.1} parent=1 // pred_fallthru
      _
    // Predicated region
    $region18: #{tpu_custom_call.1} parent=1 // pred_check
      _
    $region19: #{tpu_custom_call.1} parent=1 // pred_check_branch
      %115 = sbr.rel (0) target = $region21
    $region20: #{tpu_custom_call.1} parent=1 // pred_region
      %s117 = ssub.s32 64, 64
      %118 = vsyncadd [#allocation5], %s117
      %s120 = sshll.u32 [#allocation6], 4
      %s121 = int_to_ptr.vmem [resolvable:$true] %s120
      %123 = dma.vmem_to_hbm [thread:$0]  %s121, 64, %s1, [#allocation5]
    $region21: #{tpu_custom_call.1} parent=1 // pred_fallthru
      _
    // Predicated region
    $region22: #{tpu_custom_call.1} parent=1 // pred_check
      _
    $region23: #{tpu_custom_call.1} parent=1 // pred_check_branch
      %125 = sbr.rel (0) target = $region25
    $region24: #{tpu_custom_call.1} parent=1 // pred_region
      %126 = dma.done [#allocation5], 64
    $region25: #{tpu_custom_call.1} parent=1 // pred_fallthru
      _
    %127 = vsyncpa [#allocation4], 1
    %128 = vsyncpa [#allocation5], 1

</llo_original>
